<compile_context>
chip_gen: v6e
topology: v6e:2x2x1
jax: 0.10.0
libtpu: 0.0.40
codegen_flags: <defaults>
</compile_context>

<pallas_src>
import math
from functools import partial

import jax
import jax.numpy as jnp
from jax import lax
from jax.experimental import pallas as pl
from jax.experimental.pallas import tpu as pltpu


# Time tile on the 128-lane axis.  512+ amortises per-grid-step overhead;
# sweep 512-2048 for production T (smaller end on v7x with 64 MiB VMEM).
DEFAULT_TIME_TILE = 512

# Explicit scoped-VMEM limit: above the 16/32 MiB defaults, headroom under
# v7x's 64 MiB physical VMEM.  Actual usage at the demo config is < 2 MiB.
VMEM_LIMIT_BYTES = 48 * 1024 * 1024

# +1 if pltpu.roll follows jnp.roll's shift convention, -1 otherwise.
# Pinned once by a tiny probe kernel (at program start, not inside a trace).
_ROLL_SIGN = None


def _resolve_roll_sign():
    global _ROLL_SIGN
    if _ROLL_SIGN is not None:
        return

    def probe(x_ref, o_ref):
        o_ref[...] = pltpu.roll(x_ref[...], 1, 1)

    x = jnp.broadcast_to(jnp.arange(128, dtype=jnp.float32), (8, 128))
    y = pl.pallas_call(
        probe, out_shape=jax.ShapeDtypeStruct((8, 128), jnp.float32))(x)
    _ROLL_SIGN = 1 if float(y[0, 0]) == 127.0 else -1


def _shifted(cur, prev, shift, lanes):
    """Lane t of the result holds series[global_t - shift] (causal tap input).

    `prev` is the previous time tile of the same series (zeros on the first
    tile of each batch element).  Uses pltpu.roll (XLU slot, off the VALU/MXU
    critical path) + a select against a hoisted lane iota.
    """
    if shift == 0:
        return cur
    size = cur.shape[-1]
    s = shift if _ROLL_SIGN > 0 else size - shift   # == jnp.roll(x, shift)
    return jnp.where(lanes < shift,
                     pltpu.roll(prev, s, 1),
                     pltpu.roll(cur, s, 1))


# ---------------------------------------------------------------------------
# Single fused kernel: front conv + all ResBlocks + final head.
# ---------------------------------------------------------------------------
def _wavenet_kernel(x_ref, c_ref,
                    wf_ref, bf_ref,            # front conv  (Cr, 3*in_ch), (Cr,1)
                    wm_ref, bm_ref,            # main        (L, 2G, 3*Ci+Ccin), (L, 2G, 1)
                    wo_ref, bo_ref,            # res+skip    (L, Ci+Csk, G), (L, Ci+Csk, 1)
                    w1_ref, b1_ref,            # head 1x1    (Csk, Csk), (Csk, 1)
                    wz_ref, bz_ref,            # ZeroConv (gain folded) (Cout, Csk), (Cout, 1)
                    o_ref,
                    xprev_ref, hprev_ref,
                    *, dilations, in_ch, res_ch, gate_ch, skip_ch):
    i = pl.program_id(1)
    tt = o_ref.shape[-1]

    # Per-batch reset of the carried halo state (causal left zero padding).
    @pl.when(i == 0)
    def _():
        xprev_ref[...] = jnp.zeros_like(xprev_ref)
        hprev_ref[...] = jnp.zeros_like(hprev_ref)

    # ---------------- front conv: causal k=3, d=1, + ReLU -------------------
    xc = x_ref[0]                              # (in_ch, TT)
    xp = xprev_ref[...]
    xprev_ref[...] = xc                        # halo for the next time tile
    lanes_x = lax.broadcasted_iota(jnp.int32, xc.shape, 1)
    wf = wf_ref[...]                           # (Cr, 3*in_ch), tap-major cols
    acc = jnp.zeros((res_ch, tt), jnp.float32)
    if in_ch <= 4:
        # Tiny Cin (WaveNet front conv: Cin=1): MXU would be nearly all
        # padding -> VPU broadcast-MAC.
        for k in range(3):
            xs = _shifted(xc, xp, 2 - k, lanes_x)
            for ci in range(in_ch):
                col = k * in_ch + ci
                acc = acc + wf[:, col:col + 1] * xs[ci:ci + 1, :]
    else:
        xs = jnp.concatenate(
            [_shifted(xc, xp, 2 - k, lanes_x) for k in range(3)], axis=0)
        acc = jnp.dot(wf, xs, preferred_element_type=jnp.float32)
    h = jnp.maximum(acc + bf_ref[...], 0.0)    # fused ReLU

    # ---------------- dilated gated residual stack --------------------------
    cond = c_ref[0]                            # (Ccin, TT)
    lanes_h = lax.broadcasted_iota(jnp.int32, (res_ch, tt), 1)
    skip = jnp.zeros((skip_ch, tt), jnp.float32)
    sqrt_half = math.sqrt(0.5)
    for l, d in enumerate(dilations):
        hp = hprev_ref[l]                      # previous tile of layer input
        hprev_ref[l] = h                       # save for the next time tile
        # Stacked-K matmul: [x(t-2d); x(t-d); x(t); c(t)]  (K = 3*Ci + Ccin).
        stacked = jnp.concatenate(
            [_shifted(h, hp, 2 * d, lanes_h),
             _shifted(h, hp, d, lanes_h),
             h, cond], axis=0)
        fg = jnp.dot(wm_ref[l], stacked,
                     preferred_element_type=jnp.float32) + bm_ref[l]
        gated = jnp.tanh(fg[:gate_ch]) * jax.nn.sigmoid(fg[gate_ch:])
        # Stacked res+skip 1x1 conv: single (Ci+Csk, G) matmul, rows split.
        rs = jnp.dot(wo_ref[l], gated,
                     preferred_element_type=jnp.float32) + bo_ref[l]
        h = (h + rs[:res_ch]) * sqrt_half
        skip = skip + rs[res_ch:]

    # ---------------- head: ReLU -> 1x1 -> ReLU -> ZeroConv (gain folded) ---
    y = jnp.maximum(skip, 0.0)
    y = jnp.dot(w1_ref[...], y, preferred_element_type=jnp.float32) + b1_ref[...]
    y = jnp.maximum(y, 0.0)
    y = jnp.dot(wz_ref[...], y, preferred_element_type=jnp.float32) + bz_ref[...]
    o_ref[0] = y.astype(o_ref.dtype)


# ---------------------------------------------------------------------------
# Wrapper: weight packing (stacking / bias folding) and the pallas_call.
# ---------------------------------------------------------------------------
def _pack_params(params):
    front = params["front"]
    Cr, in_ch, _ = front["w"].shape
    # Front taps, tap-major columns: column k*in_ch + ci holds w[:, ci, k].
    wf = jnp.transpose(front["w"], (0, 2, 1)).reshape(Cr, 3 * in_ch)
    bf = front["b"][:, None]

    wm, bm, wo, bo, dil = [], [], [], [], []
    for blk in params["blocks"]:
        wfg = jnp.concatenate([blk["wf"], blk["wg"]], axis=0)        # (2G, Ci, 3)
        wc = jnp.concatenate([blk["wfc"][:, :, 0], blk["wgc"][:, :, 0]], axis=0)
        wm.append(jnp.concatenate(
            [wfg[:, :, 0], wfg[:, :, 1], wfg[:, :, 2], wc], axis=1)) # (2G, 3Ci+Ccin)
        bm.append(jnp.concatenate([blk["bf"] + blk["bfc"],
                                   blk["bg"] + blk["bgc"]])[:, None])
        wo.append(jnp.concatenate([blk["wres"][:, :, 0],
                                   blk["wskip"][:, :, 0]], axis=0))  # (Ci+Csk, G)
        bo.append(jnp.concatenate([blk["bres"], blk["bskip"]])[:, None])
        dil.append(int(blk["dilation"]))
    wm, bm, wo, bo = map(jnp.stack, (wm, bm, wo, bo))

    w1 = params["final"]["w1"][:, :, 0]
    b1 = params["final"]["b1"][:, None]
    gain = jnp.exp(params["zero"]["scale"].reshape(-1) * 3.0)        # (Cout,)
    wz = params["zero"]["w"][:, :, 0] * gain[:, None]
    bz = (params["zero"]["b"] * gain)[:, None]
    return dict(wf=wf, bf=bf, wm=wm, bm=bm, wo=wo, bo=bo,
                w1=w1, b1=b1, wz=wz, bz=bz, dilations=tuple(dil))


def wavenet_forward(x, c, params, *, time_tile=DEFAULT_TIME_TILE):
    """x: (B, in_ch, T); c: (B, cin_ch, T) -> (B, out_ch, T).  All f32 NCT."""
    _resolve_roll_sign()
    assert time_tile % 128 == 0
    B, in_ch, T = x.shape
    Ccin = c.shape[1]
    p = _pack_params(params)
    dilations = p["dilations"]
    L = len(dilations)
    Cr = p["wf"].shape[0]
    G = p["bm"].shape[1] // 2
    Ci_sk = p["wo"].shape[1]
    Csk = Ci_sk - Cr
    Cout = p["wz"].shape[0]
    # TODO(synk): multi-tile halo carry for dilations > time_tile // 2
    # (very deep stacks); not needed for this module's default depths.
    assert 2 * max(dilations) <= time_tile, "raise time_tile for this depth"

    TT = time_tile
    Tp = pl.cdiv(T, TT) * TT
    if Tp != T:
        # Causal convs: trailing zero padding never influences valid outputs.
        x = jnp.pad(x, ((0, 0), (0, 0), (0, Tp - T)))
        c = jnp.pad(c, ((0, 0), (0, 0), (0, Tp - T)))

    def time_spec(channels):
        return pl.BlockSpec((1, channels, TT), lambda b, i: (b, 0, i))

    def full_spec(arr):
        nd = arr.ndim
        return pl.BlockSpec(arr.shape, lambda b, i, _nd=nd: (0,) * _nd)

    per_sample_flops = (2 * Cr * 3 * in_ch
                        + L * (4 * G * (3 * Cr + Ccin) + 2 * Ci_sk * G)
                        + 2 * Csk * Csk + 2 * Cout * Csk)
    flops = int(B * Tp * per_sample_flops)
    transcendentals = int(B * Tp * L * 2 * G)
    weight_bytes = 4 * sum(int(p[k].size) for k in
                           ("wf", "bf", "wm", "bm", "wo", "bo",
                            "w1", "b1", "wz", "bz"))
    bytes_accessed = int(4 * B * Tp * (in_ch + Ccin + Cout) + weight_bytes)

    kernel = partial(_wavenet_kernel, dilations=dilations, in_ch=in_ch,
                     res_ch=Cr, gate_ch=G, skip_ch=Csk)
    out = pl.pallas_call(
        kernel,
        out_shape=jax.ShapeDtypeStruct((B, Cout, Tp), x.dtype),
        grid=(B, Tp // TT),
        in_specs=[time_spec(in_ch), time_spec(Ccin),
                  full_spec(p["wf"]), full_spec(p["bf"]),
                  full_spec(p["wm"]), full_spec(p["bm"]),
                  full_spec(p["wo"]), full_spec(p["bo"]),
                  full_spec(p["w1"]), full_spec(p["b1"]),
                  full_spec(p["wz"]), full_spec(p["bz"])],
        out_specs=time_spec(Cout),
        scratch_shapes=[pltpu.VMEM((in_ch, TT), jnp.float32),   # x halo carry
                        pltpu.VMEM((L, Cr, TT), jnp.float32)],  # h halo carry
        compiler_params=pltpu.CompilerParams(
            # Batch parallel (feeds both v7x TensorCores); time is sequential
            # because the halo state is carried in scratch across time tiles.
            dimension_semantics=("parallel", "arbitrary"),
            vmem_limit_bytes=VMEM_LIMIT_BYTES),
        cost_estimate=pl.CostEstimate(flops=flops,
                                      transcendentals=transcendentals,
                                      bytes_accessed=bytes_accessed),
    )(x, c, p["wf"], p["bf"], p["wm"], p["bm"], p["wo"], p["bo"],
      p["w1"], p["b1"], p["wz"], p["bz"])
    return out[:, :, :T]


# ---------------------------------------------------------------------------
# Parameter construction (weight norm / kaiming / zero init = setup, not fwd).
# ---------------------------------------------------------------------------
def _weight_norm(v, g):
    # nn.utils.weight_norm (dim=0): w = g * v / ||v||, norm over all dims but 0.
    axes = tuple(range(1, v.ndim))
    return g.reshape((-1,) + (1,) * (v.ndim - 1)) * v / jnp.sqrt(
        jnp.sum(v * v, axis=axes, keepdims=True))


def init_params(key, *, in_ch, out_ch, num_layers, res_ch, gate_ch, skip_ch,
                cin_ch):
    keys = iter(jax.random.split(key, 128))

    def wn_conv(cout, cin, k):
        v = jax.random.normal(next(keys), (cout, cin, k), jnp.float32) \
            * math.sqrt(2.0 / (cin * k))                         # kaiming-ish
        g = jax.random.uniform(next(keys), (cout,), jnp.float32, 0.5, 1.5)
        b = jax.random.normal(next(keys), (cout,), jnp.float32) * 0.1
        return _weight_norm(v, g), b

    fw, fb = wn_conv(res_ch, in_ch, 3)
    blocks = []
    for n in range(num_layers):
        wf, bf = wn_conv(gate_ch, res_ch, 3)
        wg, bg = wn_conv(gate_ch, res_ch, 3)
        wfc, bfc = wn_conv(gate_ch, cin_ch, 1)
        wgc, bgc = wn_conv(gate_ch, cin_ch, 1)
        wres, bres = wn_conv(res_ch, gate_ch, 1)
        wskip, bskip = wn_conv(skip_ch, gate_ch, 1)
        blocks.append(dict(dilation=2 ** n, wf=wf, bf=bf, wg=wg, bg=bg,
                           wfc=wfc, bfc=bfc, wgc=wgc, bgc=bgc,
                           wres=wres, bres=bres, wskip=wskip, bskip=bskip))
    w1, b1 = wn_conv(skip_ch, skip_ch, 1)
    # ZeroConv1d params are zero-initialised in PyTorch; use small random
    # values here so the numerical check actually exercises the math.
    wz = jax.random.normal(next(keys), (out_ch, skip_ch, 1), jnp.float32) * 0.1
    bz = jax.random.normal(next(keys), (out_ch,), jnp.float32) * 0.1
    sz = jax.random.normal(next(keys), (1, out_ch, 1), jnp.float32) * 0.1
    return dict(front=dict(w=fw, b=fb), blocks=blocks,
                final=dict(w1=w1, b1=b1), zero=dict(w=wz, b=bz, scale=sz))


# ---------------------------------------------------------------------------
# Pure-JAX reference (mirrors the PyTorch forward exactly).
# ---------------------------------------------------------------------------
def _conv1d_ref(x, w, b, dilation=1):
    pad = dilation * (w.shape[-1] - 1)         # causal left pad (+ tail crop)
    y = lax.conv_general_dilated(x, w, window_strides=(1,),
                                 padding=[(pad, 0)], rhs_dilation=(dilation,),
                                 dimension_numbers=("NCH", "OIH", "NCH"),
                                 precision=lax.Precision.HIGHEST)
    return y + b[None, :, None]


def wavenet_reference(x, c, params):
    h = jax.nn.relu(_conv1d_ref(x, params["front"]["w"], params["front"]["b"]))
    skip = 0.0
    for blk in params["blocks"]:
        d = blk["dilation"]
        f = _conv1d_ref(h, blk["wf"], blk["bf"], d) + \
            _conv1d_ref(c, blk["wfc"], blk["bfc"])
        g = _conv1d_ref(h, blk["wg"], blk["bg"], d) + \
            _conv1d_ref(c, blk["wgc"], blk["bgc"])
        out = jnp.tanh(f) * jax.nn.sigmoid(g)
        skip = skip + _conv1d_ref(out, blk["wskip"], blk["bskip"])
        h = (h + _conv1d_ref(out, blk["wres"], blk["bres"])) * math.sqrt(0.5)
    y = jax.nn.relu(_conv1d_ref(jax.nn.relu(skip), params["final"]["w1"],
                                params["final"]["b1"]))
    y = _conv1d_ref(y, params["zero"]["w"], params["zero"]["b"])
    return y * jnp.exp(params["zero"]["scale"] * 3.0)


if __name__ == "__main__":
    _resolve_roll_sign()                       # pin roll convention up front
    key = jax.random.PRNGKey(0)
    k_x, k_c, k_p = jax.random.split(key, 3)

    # Small but representative WaveNet config.  T is deliberately not a
    # multiple of the time tile and spans several tiles so the halo-carry and
    # tail-crop paths are exercised; 3 layers -> dilations 1, 2, 4.
    B, in_ch, out_ch, T = 2, 1, 2, 1100
    res_ch = gate_ch = skip_ch = 32
    cin_ch = 16
    num_layers = 3

    x = jax.random.normal(k_x, (B, in_ch, T), jnp.float32)
    c = jax.random.normal(k_c, (B, cin_ch, T), jnp.float32)
    params = init_params(k_p, in_ch=in_ch, out_ch=out_ch,
                         num_layers=num_layers, res_ch=res_ch,
                         gate_ch=gate_ch, skip_ch=skip_ch, cin_ch=cin_ch)

    out = jax.block_until_ready(wavenet_forward(x, c, params))
    ref = wavenet_reference(x, c, params)

    assert out.shape == (B, out_ch, T), out.shape
    max_err = float(jnp.max(jnp.abs(out - ref)))
    assert jnp.allclose(out, ref, atol=5e-2, rtol=5e-2), \
        f"mismatch vs reference, max abs diff {max_err}"
    print("KERNEL_OK")
</pallas_src>

<mosaic_0001>
module attributes {stable_mosaic.version = 11 : i64} {
  func.func @probe(%arg0: memref<8x128xf32, #tpu.memory_space<vmem>>, %arg1: memref<8x128xf32, #tpu.memory_space<vmem>>) attributes {dimension_semantics = [], scalar_prefetch = 0 : i64, scratch_operands = 0 : i64, tpu.core_type = #tpu.core_type<tc>} {
    %c0 = arith.constant 0 : index
    %c0_0 = arith.constant 0 : index
    %0 = vector.load %arg0[%c0, %c0_0] : memref<8x128xf32, #tpu.memory_space<vmem>>, vector<8x128xf32>
    %c1_i32 = arith.constant 1 : i32
    %1 = tpu.dynamic_rotate %0 by %c1_i32 dim 1 : vector<8x128xf32>, i32 -> vector<8x128xf32>
    %c0_1 = arith.constant 0 : index
    %c0_2 = arith.constant 0 : index
    %2 = vector.load %arg1[%c0_1, %c0_2] : memref<8x128xf32, #tpu.memory_space<vmem>>, vector<8x128xf32>
    tpu.vector_store %arg1[%c0_1, %c0_2], %1 {strides = array<i32>} : memref<8x128xf32, #tpu.memory_space<vmem>>, vector<8x128xf32>,
    return
  }
}

</mosaic_0001>

<llo_original>
// kernel: tpu_custom_call.1
$region0: #{tpu_custom_call.1}
  #allocation0 [shape = 'u32[]', space=smem, size = 0x4, offset = 0x4, fixed_abs, tag = 'smem constant byte address 0x4 - core index']
  #allocation1 [shape = 'u32[144,128]{1,0:T(1,128)}', space=vmem, size = 0x12000, scoped, tag = 'internal scratch']
  %s0 = inlined_call_operand.hbm [shape: f32[8,128], index: 0, kind: input, shape index: {}]
  %s1 = inlined_call_operand.hbm [shape: f32[8,128], index: 1, kind: output, shape index: {}]
  %s2 = sld [smem:[#allocation0]]
  $region18: #{tpu_custom_call.1} parent=0
    _
  %s4 = ssub.s32 1, %s2
  %s5 = scalar_select 0, %s4, %s2
  $region1: #{tpu_custom_call.1} parent=0
    #allocation2 [shape = 'u8[4096]{0}', space=vmem, size = 0x1000, scoped, tag = 'input window, operand 0, single buffered']
    #allocation3 [shape = 's32[1]{0}', space=sflag, size = 0x4, scoped, tag = 'scoped memory for tpu_custom_call.1']
    #allocation4 [shape = 's32[1]{0}', space=sflag, size = 0x4, scoped, tag = 'scoped memory for tpu_custom_call.1']
    #allocation5 [shape = 'u8[4096]{0}', space=vmem, size = 0x1000, scoped, tag = 'output window, operand 0, single buffered']
    %6 = vsyncpa [#allocation3], 0
    %7 = vsyncpa [#allocation4], 0
    // Predicated region
    $region2: #{tpu_custom_call.1} parent=1 // pred_check
      _
    $region3: #{tpu_custom_call.1} parent=1 // pred_check_branch
      %9 = sbr.rel (0) target = $region5
    $region4: #{tpu_custom_call.1} parent=1 // pred_region
      %s11 = ssub.s32 128, 128
      %12 = vsyncadd [#allocation3], %s11
      %s14 = sshll.u32 [#allocation2], 4
      %s15 = int_to_ptr.vmem [resolvable:$true] %s14
      %17 = dma.hbm_to_vmem [thread:$0]  %s0, 128, %s15, [#allocation3]
    $region5: #{tpu_custom_call.1} parent=1 // pred_fallthru
      _
    // Predicated region
    $region6: #{tpu_custom_call.1} parent=1 // pred_check
      _
    $region7: #{tpu_custom_call.1} parent=1 // pred_check_branch
      %19 = sbr.rel (0) target = $region9
    $region8: #{tpu_custom_call.1} parent=1 // pred_region
      %20 = dma.done [#allocation3], 128
    $region9: #{tpu_custom_call.1} parent=1 // pred_fallthru
      _
    %v21 = vld [vmem:[#allocation2] sm:$0xff]
    %22 = vrot.lane.b32.xlu0 %v21, 1
    %v23 = vpop.permute.xlu0 %22
    %24 = vst [vmem:[#allocation5] sm:$0xff] %v23
    // Predicated region
    $region10: #{tpu_custom_call.1} parent=1 // pred_check
      _
    $region11: #{tpu_custom_call.1} parent=1 // pred_check_branch
      %26 = sbr.rel (0) target = $region13
    $region12: #{tpu_custom_call.1} parent=1 // pred_region
      %s28 = ssub.s32 128, 128
      %29 = vsyncadd [#allocation4], %s28
      %s31 = sshll.u32 [#allocation5], 4
      %s32 = int_to_ptr.vmem [resolvable:$true] %s31
      %34 = dma.vmem_to_hbm [thread:$0]  %s32, 128, %s1, [#allocation4]
    $region13: #{tpu_custom_call.1} parent=1 // pred_fallthru
      _
    // Predicated region
    $region14: #{tpu_custom_call.1} parent=1 // pred_check
      _
    $region15: #{tpu_custom_call.1} parent=1 // pred_check_branch
      %36 = sbr.rel (0) target = $region17
    $region16: #{tpu_custom_call.1} parent=1 // pred_region
      %37 = dma.done [#allocation4], 128
    $region17: #{tpu_custom_call.1} parent=1 // pred_fallthru
      _
    %38 = vsyncpa [#allocation3], 1
    %39 = vsyncpa [#allocation4], 1

</llo_original>
